<compile_context>
chip_gen: v5e
topology: v5e:2x2
jax: 0.10.0
libtpu: 0.0.40
codegen_flags: <defaults>
</compile_context>

<pallas_src>
import jax
import jax.numpy as jnp
from jax.experimental import pallas as pl
from jax.experimental.pallas import tpu as pltpu


def _round_up(n, m):
    return ((n + m - 1) // m) * m


def _value_kernel(x_ref, w1_ref, b1_ref, w2_ref, b2_ref, o_ref):
    # Layer 1 on the MXU with the batch on the *lane* axis:
    #   h[f, b] = sum_d w1[f, d] * x[b, d]     (same pattern as attention q @ k^T)
    # x stays in its natural (tb, obs_dim) HBM layout (no wrapper transpose), and
    # every downstream tensor is lane-dense over the batch.
    h = jax.lax.dot_general(
        w1_ref[...], x_ref[...],
        dimension_numbers=(((1,), (1,)), ((), ())),
        preferred_element_type=jnp.float32,
    )                                                   # (hidden, tb) f32
    h = jnp.maximum(h + b1_ref[...], 0.0)               # bias (lane-broadcast) + ReLU
    # Layer 2 (out_features == 1): (1, hidden) @ (hidden, tb) -> (1, tb).
    # Result is already lane-dense, so the store is a full-width vst (no vst.msk).
    v = jnp.dot(w2_ref[...], h, preferred_element_type=jnp.float32)
    o_ref[...] = (v + b2_ref[0, 0]).astype(o_ref.dtype)


def _choose_tb(batch, obs_dim, itemsize, block_b):
    """Batch-tile size: ~4 MiB of (lane-padded) x per grid step, >=4 steps for
    large batches (v7x megacore), multiple of 128 for lane-dense output rows."""
    if block_b is not None:
        tb = max(8, _round_up(int(block_b), 8))
    else:
        row_bytes = _round_up(obs_dim, 128) * itemsize      # lane-padded VMEM row
        tb = (4 * 1024 * 1024) // row_bytes                  # ~4 MiB x tile in VMEM
        tb = min(tb, _round_up(pl.cdiv(batch, 4), 128))      # keep >=4 grid steps
        tb = min(max(tb, 128), 32768)
    if tb >= batch:
        return batch                     # single block == full array (no raggedness)
    return max(128, (tb // 128) * 128) if tb >= 128 else tb


def value_network_forward(x, w1, b1, w2, b2, *, block_b=None):
    """ValueNetwork forward: relu(x @ w1.T + b1) @ w2.T + b2, squeezed to (B,).

    x: (B, obs_dim); weights in PyTorch nn.Linear layout: w1 (64, obs_dim),
    b1 (64,), w2 (1, 64), b2 (1,).  x may be float32 or bfloat16 (w1 is cast to
    x.dtype; accumulation / bias / ReLU / output stay float32).
    """
    batch, obs_dim = x.shape
    hidden = w1.shape[0]
    itemsize = x.dtype.itemsize

    tb = _choose_tb(batch, obs_dim, itemsize, block_b)
    num_tiles = pl.cdiv(batch, tb)

    w1c = w1.astype(x.dtype)                              # tiny, VMEM-resident
    b1_col = b1.reshape(hidden, 1).astype(jnp.float32)
    w2_row = w2.reshape(1, hidden).astype(jnp.float32)
    b2_2d = b2.reshape(1, 1).astype(jnp.float32)

    # Explicit VMEM budget: double-buffered lane-padded x tile, double-buffered
    # output row, f32 intermediates (h and friends), resident params.
    padded_obs = _round_up(obs_dim, 128)
    vmem_est = (2 * tb * padded_obs * itemsize            # x tile, 2 buffers
                + 2 * 8 * tb * 4                          # (1, tb) out, sublane-padded
                + 4 * hidden * tb * 4                     # h + temporaries
                + 4 * hidden * padded_obs * 4)            # resident params
    vmem_limit = int(min(max(32 * 1024 * 1024, vmem_est * 3 // 2),
                         64 * 1024 * 1024))

    cost = pl.CostEstimate(
        flops=2 * batch * obs_dim * hidden + 2 * batch * hidden,
        transcendentals=0,
        bytes_accessed=(batch * obs_dim * itemsize        # streamed x
                        + hidden * obs_dim * itemsize     # w1 (resident)
                        + 4 * (2 * hidden + 1)            # b1, w2, b2
                        + num_tiles * tb * 4),            # output
    )

    out = pl.pallas_call(
        _value_kernel,
        out_shape=jax.ShapeDtypeStruct((num_tiles, tb), jnp.float32),
        grid_spec=pltpu.PrefetchScalarGridSpec(
            num_scalar_prefetch=0,
            grid=(num_tiles,),
            in_specs=[
                pl.BlockSpec((tb, obs_dim), lambda i: (i, 0)),       # x (streamed)
                pl.BlockSpec((hidden, obs_dim), lambda i: (0, 0)),   # w1 (resident)
                pl.BlockSpec((hidden, 1), lambda i: (0, 0)),         # b1 (resident)
                pl.BlockSpec((1, hidden), lambda i: (0, 0)),         # w2 (resident)
                pl.BlockSpec(memory_space=pltpu.MemorySpace.SMEM),   # b2 scalar
            ],
            out_specs=pl.BlockSpec((1, tb), lambda i: (i, 0)),       # lane-dense row
        ),
        compiler_params=pltpu.CompilerParams(
            dimension_semantics=("parallel",),          # shard tiles across v7x cores
            vmem_limit_bytes=vmem_limit),
        cost_estimate=cost,
    )(x, w1c, b1_col, w2_row, b2_2d)

    # (num_tiles, tb) row-major flatten matches batch-tile order; garbage from the
    # ragged last x block lands past index `batch` and is sliced off here.
    return out.reshape(-1)[:batch]


def init_params(key, obs_dim, hidden=64):
    """Deterministic init mirroring PyTorch nn.Linear shapes (weight = (out, in))."""
    k1, k2, k3, k4 = jax.random.split(key, 4)
    bound1 = 1.0 / jnp.sqrt(obs_dim)
    bound2 = 1.0 / jnp.sqrt(hidden)
    w1 = jax.random.uniform(k1, (hidden, obs_dim), jnp.float32, -bound1, bound1)
    b1 = jax.random.uniform(k2, (hidden,), jnp.float32, -bound1, bound1)
    w2 = jax.random.uniform(k3, (1, hidden), jnp.float32, -bound2, bound2)
    b2 = jax.random.uniform(k4, (1,), jnp.float32, -bound2, bound2)
    return w1, b1, w2, b2


if __name__ == "__main__":
    key = jax.random.PRNGKey(0)
    kx1, kx2, kp = jax.random.split(key, 3)

    OBS_DIM, HIDDEN = 16, 64
    w1, b1, w2, b2 = init_params(kp, OBS_DIM, hidden=HIDDEN)

    def ref_fn(xv):
        h = jnp.maximum(xv @ w1.T + b1, 0.0)
        return (h @ w2.T + b2)[:, 0]

    # MXU f32 matmuls at default precision use bf16 passes -> modest tolerance.
    TOL = dict(atol=1.5e-2, rtol=1.5e-2)

    # 1) Small single-tile case (typical RL usage of ValueNetwork).
    B1 = 4
    x1 = jax.random.normal(kx1, (B1, OBS_DIM), dtype=jnp.float32)
    out1 = jax.block_until_ready(value_network_forward(x1, w1, b1, w2, b2))
    assert out1.shape == (B1,)
    assert jnp.allclose(out1, ref_fn(x1), **TOL)

    # 2) Multi-tile, ragged last block (261 = 2*128 + 5): exercises the streamed
    #    path, the cdiv grid (no wrapper pad) and the lane-dense output layout.
    B2 = 261
    x2 = jax.random.normal(kx2, (B2, OBS_DIM), dtype=jnp.float32)
    out2 = jax.block_until_ready(
        value_network_forward(x2, w1, b1, w2, b2, block_b=128))
    assert out2.shape == (B2,)
    assert jnp.allclose(out2, ref_fn(x2), **TOL)

    print("KERNEL_OK")
</pallas_src>

<mosaic_0001>
module attributes {stable_mosaic.version = 11 : i64} {
  func.func @_value_kernel(%arg0: i32, %arg1: memref<4x16xf32, #tpu.memory_space<vmem>>, %arg2: memref<64x16xf32, #tpu.memory_space<vmem>>, %arg3: memref<64x1xf32, #tpu.memory_space<vmem>>, %arg4: memref<1x64xf32, #tpu.memory_space<vmem>>, %arg5: memref<1x1xf32, #tpu.memory_space<smem>>, %arg6: memref<1x4xf32, #tpu.memory_space<vmem>>) attributes {dimension_semantics = [#tpu.dimension_semantics<parallel>], iteration_bounds = array<i64: 1>, scalar_prefetch = 0 : i64, scratch_operands = 0 : i64, tpu.core_type = #tpu.core_type<tc>, window_params = [{transform_indices = @transform_0, window_bounds = array<i64: 4, 16>}, {pipeline_mode = #tpu.pipeline_mode<synchronous>, transform_indices = @transform_1, window_bounds = array<i64: 64, 16>}, {pipeline_mode = #tpu.pipeline_mode<synchronous>, transform_indices = @transform_2, window_bounds = array<i64: 64, 1>}, {pipeline_mode = #tpu.pipeline_mode<synchronous>, transform_indices = @transform_3, window_bounds = array<i64: 1, 64>}, {transform_indices = @transform_4, window_bounds = array<i64: 1, 1>}, {transform_indices = @transform_5, window_bounds = array<i64: 1, 4>}]} {
    %c0 = arith.constant 0 : index
    %c0_0 = arith.constant 0 : index
    %0 = vector.load %arg2[%c0, %c0_0] : memref<64x16xf32, #tpu.memory_space<vmem>>, vector<64x16xf32>
    %c0_1 = arith.constant 0 : index
    %c0_2 = arith.constant 0 : index
    %1 = vector.load %arg1[%c0_1, %c0_2] : memref<4x16xf32, #tpu.memory_space<vmem>>, vector<4x16xf32>
    %cst = arith.constant dense<0.000000e+00> : vector<64x4xf32>
    %2 = tpu.matmul %0, %1, %cst {dimension_numbers = #tpu.dot_dimension_numbers<[1], [1], [0], [0], [0, 0, 1, 0], [], []>} : vector<64x16xf32>, vector<4x16xf32>, vector<64x4xf32> -> vector<64x4xf32>
    %c0_3 = arith.constant 0 : index
    %c0_4 = arith.constant 0 : index
    %3 = vector.load %arg3[%c0_3, %c0_4] : memref<64x1xf32, #tpu.memory_space<vmem>>, vector<64x1xf32>
    %4 = vector.broadcast %3 : vector<64x1xf32> to vector<64x4xf32>
    %5 = arith.addf %2, %4 : vector<64x4xf32>
    %cst_5 = arith.constant 0.000000e+00 : f32
    %6 = vector.broadcast %cst_5 : f32 to vector<64x4xf32>
    %7 = arith.maximumf %5, %6 : vector<64x4xf32>
    %c0_6 = arith.constant 0 : index
    %c0_7 = arith.constant 0 : index
    %8 = vector.load %arg4[%c0_6, %c0_7] : memref<1x64xf32, #tpu.memory_space<vmem>>, vector<1x64xf32>
    %cst_8 = arith.constant dense<0.000000e+00> : vector<1x4xf32>
    %9 = tpu.matmul %8, %7, %cst_8 {dimension_numbers = #tpu.dot_dimension_numbers<[1], [0], [0], [1], [0, 0, 1, 1], [], []>} : vector<1x64xf32>, vector<64x4xf32>, vector<1x4xf32> -> vector<1x4xf32>
    %c0_9 = arith.constant 0 : index
    %c0_10 = arith.constant 0 : index
    %10 = memref.load %arg5[%c0_9, %c0_10] : memref<1x1xf32, #tpu.memory_space<smem>>
    %11 = vector.broadcast %10 : f32 to vector<1x4xf32>
    %12 = arith.addf %9, %11 : vector<1x4xf32>
    %c0_11 = arith.constant 0 : index
    %c0_12 = arith.constant 0 : index
    %13 = vector.load %arg6[%c0_11, %c0_12] : memref<1x4xf32, #tpu.memory_space<vmem>>, vector<1x4xf32>
    tpu.vector_store %arg6[%c0_11, %c0_12], %12 {strides = array<i32>} : memref<1x4xf32, #tpu.memory_space<vmem>>, vector<1x4xf32>,
    return
  }
  func.func @transform_0(%arg0: i32) -> (i32, i32) {
    %c0_i32 = arith.constant 0 : i32
    %c0_i32_0 = arith.constant 0 : i32
    return %arg0, %c0_i32 : i32, i32
  }
  func.func @transform_1(%arg0: i32) -> (i32, i32) {
    %c0_i32 = arith.constant 0 : i32
    %c0_i32_0 = arith.constant 0 : i32
    %c0_i32_1 = arith.constant 0 : i32
    return %c0_i32, %c0_i32_0 : i32, i32
  }
  func.func @transform_2(%arg0: i32) -> (i32, i32) {
    %c0_i32 = arith.constant 0 : i32
    %c0_i32_0 = arith.constant 0 : i32
    %c0_i32_1 = arith.constant 0 : i32
    return %c0_i32, %c0_i32_0 : i32, i32
  }
  func.func @transform_3(%arg0: i32) -> (i32, i32) {
    %c0_i32 = arith.constant 0 : i32
    %c0_i32_0 = arith.constant 0 : i32
    %c0_i32_1 = arith.constant 0 : i32
    return %c0_i32, %c0_i32_0 : i32, i32
  }
  func.func @transform_4(%arg0: i32) -> (i32, i32) {
    %c0_i32 = arith.constant 0 : i32
    %c0_i32_0 = arith.constant 0 : i32
    %c0_i32_1 = arith.constant 0 : i32
    return %c0_i32, %c0_i32_0 : i32, i32
  }
  func.func @transform_5(%arg0: i32) -> (i32, i32) {
    %c0_i32 = arith.constant 0 : i32
    %c0_i32_0 = arith.constant 0 : i32
    return %arg0, %c0_i32 : i32, i32
  }
}

</mosaic_0001>

<llo_original>
// kernel: tpu_custom_call.1
$region0: #{tpu_custom_call.1}
  #allocation0 [shape = 'u32[]', space=smem, size = 0x4, offset = 0x4, fixed_abs, tag = 'smem constant byte address 0x4 - core index']
  #allocation1 [shape = 'u32[72,128]{1,0:T(1,128)}', space=vmem, size = 0x9000, scoped, tag = 'internal scratch']
  #allocation2 [shape = 'f32[1,1]{1,0:T(1,128)S(6)}', space=smem, size = 0x200, scoped, tag = 'scoped memory for tpu_custom_call.1']
  %s0 = inlined_call_operand.vmem [shape: f32[4,16], index: 0, kind: input, shape index: {}]
  %s1 = inlined_call_operand.vmem [shape: f32[64,16], index: 1, kind: input, shape index: {}]
  %s2 = inlined_call_operand.vmem [shape: f32[64,1], index: 2, kind: input, shape index: {}]
  %s3 = inlined_call_operand.vmem [shape: f32[1,64], index: 3, kind: input, shape index: {}]
  %s4 = inlined_call_operand.<no memory space> [shape: f32[1,1], index: 4, kind: input, shape index: {}]
  %s5 = inlined_call_operand.hbm [shape: f32[1,4], index: 5, kind: output, shape index: {}]
  %s6 = sld [smem:[#allocation0]]
  $region30: #{tpu_custom_call.1} parent=0
    _
  %s8 = ssub.s32 1, %s6
  %s9 = scalar_select 0, %s8, %s6
  %10 = sst [smem:[#allocation2]] %s4
  $region1: #{tpu_custom_call.1} parent=0
    #allocation3 [shape = 'u8[512]{0}', space=vmem, size = 0x400, scoped, tag = 'output window, operand 0, single buffered']
    #allocation4 [shape = 's32[1]{0}', space=sflag, size = 0x4, scoped, tag = 'scoped memory for tpu_custom_call.1']
    %11 = vsyncpa [#allocation4], 0
    // Predicated region
    $region2: #{tpu_custom_call.1} parent=1 // pred_check
      _
    $region3: #{tpu_custom_call.1} parent=1 // pred_check_branch
      %13 = sbr.rel (0) target = $region5
    $region4: #{tpu_custom_call.1} parent=1 // pred_region
      _
    $region5: #{tpu_custom_call.1} parent=1 // pred_fallthru
      _
    // Predicated region
    $region6: #{tpu_custom_call.1} parent=1 // pred_check
      _
    $region7: #{tpu_custom_call.1} parent=1 // pred_check_branch
      %15 = sbr.rel (0) target = $region9
    $region8: #{tpu_custom_call.1} parent=1 // pred_region
      _
    $region9: #{tpu_custom_call.1} parent=1 // pred_fallthru
      _
    // Predicated region
    $region10: #{tpu_custom_call.1} parent=1 // pred_check
      _
    $region11: #{tpu_custom_call.1} parent=1 // pred_check_branch
      %17 = sbr.rel (0) target = $region13
    $region12: #{tpu_custom_call.1} parent=1 // pred_region
      _
    $region13: #{tpu_custom_call.1} parent=1 // pred_fallthru
      _
    // Predicated region
    $region14: #{tpu_custom_call.1} parent=1 // pred_check
      _
    $region15: #{tpu_custom_call.1} parent=1 // pred_check_branch
      %19 = sbr.rel (0) target = $region17
    $region16: #{tpu_custom_call.1} parent=1 // pred_region
      _
    $region17: #{tpu_custom_call.1} parent=1 // pred_fallthru
      _
    // Predicated region
    $region18: #{tpu_custom_call.1} parent=1 // pred_check
      _
    $region19: #{tpu_custom_call.1} parent=1 // pred_check_branch
      %21 = sbr.rel (0) target = $region21
    $region20: #{tpu_custom_call.1} parent=1 // pred_region
      _
    $region21: #{tpu_custom_call.1} parent=1 // pred_fallthru
      _
    %v22 = vld [vmem:[%s1] sm:$0xff]
    %v23 = vld [vmem:[%s1 + $0x8] sm:$0xff]
    %v24 = vld [vmem:[%s1 + $0x10] sm:$0xff]
    %v25 = vld [vmem:[%s1 + $0x18] sm:$0xff]
    %v26 = vld [vmem:[%s1 + $0x20] sm:$0xff]
    %v27 = vld [vmem:[%s1 + $0x28] sm:$0xff]
    %v28 = vld [vmem:[%s1 + $0x30] sm:$0xff]
    %v29 = vld [vmem:[%s1 + $0x38] sm:$0xff]
    %v30 = vld [vmem:[%s0] sm:$0xf]
    %v31 = vld [vmem:[%s2] sm:$0xff]
    %v32 = vld [vmem:[%s2 + $0x8] sm:$0xff]
    %v33 = vld [vmem:[%s2 + $0x10] sm:$0xff]
    %v34 = vld [vmem:[%s2 + $0x18] sm:$0xff]
    %v35 = vld [vmem:[%s2 + $0x20] sm:$0xff]
    %v36 = vld [vmem:[%s2 + $0x28] sm:$0xff]
    %v37 = vld [vmem:[%s2 + $0x30] sm:$0xff]
    %v38 = vld [vmem:[%s2 + $0x38] sm:$0xff]
    %40 = vset.pattern.permute.xlu0 0
    %41 = vperm.xlu0 %40, %v31
    %v42 = vpop.permute.xlu0 %41
    %45 = vset.pattern.permute.xlu0 0
    %46 = vperm.xlu0 %45, %v32
    %v47 = vpop.permute.xlu0 %46
    %50 = vset.pattern.permute.xlu0 0
    %51 = vperm.xlu0 %50, %v33
    %v52 = vpop.permute.xlu0 %51
    %55 = vset.pattern.permute.xlu0 0
    %56 = vperm.xlu0 %55, %v34
    %v57 = vpop.permute.xlu0 %56
    %60 = vset.pattern.permute.xlu0 0
    %61 = vperm.xlu0 %60, %v35
    %v62 = vpop.permute.xlu0 %61
    %65 = vset.pattern.permute.xlu0 0
    %66 = vperm.xlu0 %65, %v36
    %v67 = vpop.permute.xlu0 %66
    %70 = vset.pattern.permute.xlu0 0
    %71 = vperm.xlu0 %70, %v37
    %v72 = vpop.permute.xlu0 %71
    %75 = vset.pattern.permute.xlu0 0
    %76 = vperm.xlu0 %75, %v38
    %v77 = vpop.permute.xlu0 %76
    %vm79 = vcmask 130048
    %v81 = vsel %vm79, %v22, 0
    %v84 = vsel %vm79, %v23, 0
    %v87 = vsel %vm79, %v24, 0
    %v90 = vsel %vm79, %v25, 0
    %v93 = vsel %vm79, %v26, 0
    %v96 = vsel %vm79, %v27, 0
    %v99 = vsel %vm79, %v28, 0
    %v102 = vsel %vm79, %v29, 0
    %v105 = vsel %vm79, %v30, 0
    %107 = vmatpush.xpose.msra.mxu0 0.0
    %108 = vmatpush.xpose.msra.mxu0 0.0
    %109 = vmatpush.xpose.msra.mxu0 0.0
    %110 = vmatpush.xpose.msra.mxu0 0.0
    %111 = vmatpush.xpose.msra.mxu0 0.0
    %112 = vmatpush.xpose.msra.mxu0 0.0
    %113 = vmatpush.xpose.msra.mxu0 0.0
    %114 = vmatpush.xpose.msra.mxu0 0.0
    %115 = vmatpush.xpose.msra.mxu0 0.0
    %116 = vmatpush.xpose.msra.mxu0 0.0
    %117 = vmatpush.xpose.msra.mxu0 0.0
    %118 = vmatpush.xpose.msra.mxu0 0.0
    %119 = vmatpush.xpose.msra.mxu0 0.0
    %120 = vmatpush.xpose.msra.mxu0 0.0
    %121 = vmatpush.xpose.msra.mxu0 0.0
    %122 = vmatpush.xpose.msra.mxu0 %v105
    %123 = vmatmul.f32.gmra.mxu0 %v81
    %v124 = vpop.f32.mrf.mxu0
    %v125 = vadd.f32 %v42, %v124
    %126 = vmatmul.f32.gmra.mxu0 %v84
    %v127 = vpop.f32.mrf.mxu0
    %v128 = vadd.f32 %v47, %v127
    %129 = vmatmul.f32.gmra.mxu0 %v87
    %v130 = vpop.f32.mrf.mxu0
    %v131 = vadd.f32 %v52, %v130
    %132 = vmatmul.f32.gmra.mxu0 %v90
    %v133 = vpop.f32.mrf.mxu0
    %v134 = vadd.f32 %v57, %v133
    %135 = vmatmul.f32.gmra.mxu0 %v93
    %v136 = vpop.f32.mrf.mxu0
    %v137 = vadd.f32 %v62, %v136
    %138 = vmatmul.f32.gmra.mxu0 %v96
    %v139 = vpop.f32.mrf.mxu0
    %v140 = vadd.f32 %v67, %v139
    %141 = vmatmul.f32.gmra.mxu0 %v99
    %v142 = vpop.f32.mrf.mxu0
    %v143 = vadd.f32 %v72, %v142
    %144 = vmatmul.f32.gmra.mxu0 %v102
    %v145 = vpop.f32.mrf.mxu0
    %v146 = vadd.f32 %v77, %v145
    %147 = vdwg.mxu0
    %v148 = vmax.f32 %v125, 0.0
    %v149 = vmax.f32 %v128, 0.0
    %v150 = vmax.f32 %v131, 0.0
    %v151 = vmax.f32 %v134, 0.0
    %v152 = vmax.f32 %v137, 0.0
    %v153 = vmax.f32 %v140, 0.0
    %v154 = vmax.f32 %v143, 0.0
    %v155 = vmax.f32 %v146, 0.0
    %v156 = vld [vmem:[%s3] sm:$0x1]
    %s157 = sld [smem:[#allocation2]]
    %v158 = vstv %s157
    %vm159 = vcmask 523264
    %v161 = vsel %vm159, %v156, 0
    %163 = vmatpush.msra.mxu0 0.0
    %164 = vmatpush.msra.mxu0 0.0
    %165 = vmatpush.msra.mxu0 0.0
    %166 = vmatpush.msra.mxu0 0.0
    %167 = vmatpush.msra.mxu0 0.0
    %168 = vmatpush.msra.mxu0 0.0
    %169 = vmatpush.msra.mxu0 0.0
    %170 = vmatpush.msra.mxu0 0.0
    %171 = vmatpush.msra.mxu0 %v155
    %172 = vmatpush.msra.mxu0 %v154
    %173 = vmatpush.msra.mxu0 %v153
    %174 = vmatpush.msra.mxu0 %v152
    %175 = vmatpush.msra.mxu0 %v151
    %176 = vmatpush.msra.mxu0 %v150
    %177 = vmatpush.msra.mxu0 %v149
    %178 = vmatpush.msra.mxu0 %v148
    %179 = vmatmul.f32.gmra.mxu0 %v161
    %v180 = vpop.f32.mrf.mxu0
    %v181 = vadd.f32 %v158, %v180
    %182 = vdwg.mxu0
    %vm183 = vcmask 24576
    %184 = vst.msk [vmem:[#allocation3] sm:$0x1] %vm183, %v181
    // Predicated region
    $region22: #{tpu_custom_call.1} parent=1 // pred_check
      _
    $region23: #{tpu_custom_call.1} parent=1 // pred_check_branch
      %186 = sbr.rel (0) target = $region25
    $region24: #{tpu_custom_call.1} parent=1 // pred_region
      %188 = vsyncadd [#allocation4], 0
      %s190 = sshll.u32 [#allocation3], 4
      %s191 = int_to_ptr.vmem [resolvable:$true] %s190
      %s192 = sshll.u32 %s5, 4
      %s193 = int_to_ptr.hbm [resolvable:$true] %s192
      %195 = dma.vmem_to_hbm [thread:$0]  %s191, 16, %s193, [#allocation4]
    $region25: #{tpu_custom_call.1} parent=1 // pred_fallthru
      _
    // Predicated region
    $region26: #{tpu_custom_call.1} parent=1 // pred_check
      _
    $region27: #{tpu_custom_call.1} parent=1 // pred_check_branch
      %197 = sbr.rel (0) target = $region29
    $region28: #{tpu_custom_call.1} parent=1 // pred_region
      %199 = dma.done [#allocation4], 16
    $region29: #{tpu_custom_call.1} parent=1 // pred_fallthru
      _
    %200 = vsyncpa [#allocation4], 1

</llo_original>
